<compile_context>
chip_gen: v5e
topology: v5e:2x2
jax: 0.10.0
libtpu: 0.0.40
codegen_flags: <defaults>
</compile_context>

<pallas_src>
import functools

import jax
import jax.numpy as jnp
from jax.experimental import pallas as pl
from jax.experimental.pallas import tpu as pltpu


def _round_up(x, m):
    return (x + m - 1) // m * m


# ---------------------------------------------------------------------------
# Kernel helpers
# ---------------------------------------------------------------------------
def _conv_accum(x_ref, colw_ref, w_ref, b_ref, xin_ref, rhs_ref, *,
                K, pad, W, HW, Cin, L):
    """Fused im2col + single MXU matmul.  Returns (Cout, H*W) f32 conv + bias."""
    lead = pad * (W + 1)  # pad zero rows on top (pad*W) + left-halo shift (pad)

    # Zero-filled "flat line buffer": leading zeros give the top/left halo,
    # trailing zeros give the bottom/right halo.
    xin_ref[...] = jnp.zeros(xin_ref.shape, xin_ref.dtype)
    xin_ref[:, lead:lead + HW] = x_ref[0]

    # Column-in-row index (precomputed in the wrapper).  Taps with kw != pad
    # wrap across row boundaries in the flat layout, so their out-of-row
    # columns must be zeroed before they enter the contraction.
    col = colw_ref[...]  # (1, HW) int32
    keep = []
    for kw in range(K):
        shift = kw - pad
        if shift < 0:
            keep.append(col >= -shift)
        elif shift > 0:
            keep.append(col < W - shift)
        else:
            keep.append(None)

    # Scatter the K*K lane-shifted copies of the image into the im2col scratch:
    #   rhs[(kh*K + kw)*Cin + c, q] = xpad[c, q // W + kh, q % W + kw]
    for kh in range(K):
        for kw in range(K):
            tap = kh * K + kw
            off = kh * W + kw
            piece = xin_ref[:, off:off + HW]          # (Cin, HW) lane shift
            if keep[kw] is not None:
                piece = jnp.where(keep[kw], piece, 0)
            rhs_ref[tap * Cin:(tap + 1) * Cin, :] = piece

    # One fused MXU matmul: (Cout, K*K*Cin) @ (K*K*Cin, HW) -> (Cout, HW) f32.
    acc = jnp.dot(w_ref[...], rhs_ref[...], preferred_element_type=jnp.float32)
    return acc + b_ref[...].astype(jnp.float32)       # bias broadcast over lanes


def _conv_relu_kernel(x_ref, colw_ref, w_ref, b_ref, o_ref, xin_ref, rhs_ref, *,
                      K, pad, W, HW, Cin, L):
    acc = _conv_accum(x_ref, colw_ref, w_ref, b_ref, xin_ref, rhs_ref,
                      K=K, pad=pad, W=W, HW=HW, Cin=Cin, L=L)
    o_ref[0] = jnp.maximum(acc, 0.0).astype(o_ref.dtype)


def _conv_ln_relu_kernel(x_ref, colw_ref, w_ref, b_ref, g_ref, beta_ref, o_ref,
                         xin_ref, rhs_ref, *, K, pad, W, HW, Cin, L, eps):
    acc = _conv_accum(x_ref, colw_ref, w_ref, b_ref, xin_ref, rhs_ref,
                      K=K, pad=pad, W=W, HW=HW, Cin=Cin, L=L)
    # LayerNorm over the whole (Cout, H*W) slab of this batch element
    # (biased variance, eps inside rsqrt -> matches torch.nn.LayerNorm([C,H,W])).
    mean = jnp.mean(acc)
    cent = acc - mean
    var = jnp.mean(cent * cent)
    acc = cent * jax.lax.rsqrt(var + eps)
    acc = acc * g_ref[...].astype(jnp.float32) + beta_ref[...].astype(jnp.float32)
    o_ref[0] = jnp.maximum(acc, 0.0).astype(o_ref.dtype)


# ---------------------------------------------------------------------------
# Wrapper
# ---------------------------------------------------------------------------
def conv_block(x_nchw, conv_weight, conv_bias, *, padding=1, norm=False,
               ln_weight=None, ln_bias=None, eps=1e-5):
    """Forward pass of ConvBlock.  x_nchw: (N, Cin, H, W) -> (N, Cout, H, W)."""
    N, Cin, H, W = x_nchw.shape
    Cout, Cin_w, K, K2 = conv_weight.shape
    assert Cin_w == Cin and K == K2
    if 2 * padding != K - 1:
        # TODO(synk): only 'same' convs (2*padding == kernel_size-1, the module
        # default k=3/p=1) use the fused flat-shift kernel.
        raise NotImplementedError("conv_block kernel requires 2*padding == kernel_size - 1")

    HW = H * W
    KKC = K * K * Cin
    L = _round_up(HW + (K - 1) * (W + 1), 128)  # padded flat line-buffer length

    # Free, contiguous reshapes only -- no transposes / pads in HBM.
    x_flat = x_nchw.reshape(N, Cin, HW)
    colw = (jnp.arange(HW, dtype=jnp.int32) % W).reshape(1, HW)
    wmat = jnp.transpose(conv_weight, (0, 2, 3, 1)).reshape(Cout, KKC)  # tiny
    bias = conv_bias.reshape(Cout, 1)

    in_specs = [
        pl.BlockSpec((1, Cin, HW), lambda n: (n, 0, 0)),   # image (unpadded, flat)
        pl.BlockSpec((1, HW), lambda n: (0, 0)),           # column-in-row index
        pl.BlockSpec((Cout, KKC), lambda n: (0, 0)),       # fused conv weights
        pl.BlockSpec((Cout, 1), lambda n: (0, 0)),         # conv bias
    ]
    args = [x_flat, colw, wmat, bias]

    if norm:
        assert ln_weight is not None and ln_bias is not None
        assert ln_weight.shape == (Cout, H, W) and ln_bias.shape == (Cout, H, W)
        gamma = ln_weight.reshape(Cout, HW)   # free reshape, lane-dense in VMEM
        beta = ln_bias.reshape(Cout, HW)
        in_specs += [
            pl.BlockSpec((Cout, HW), lambda n: (0, 0)),
            pl.BlockSpec((Cout, HW), lambda n: (0, 0)),
        ]
        args += [gamma, beta]
        kernel = functools.partial(_conv_ln_relu_kernel, K=K, pad=padding,
                                   W=W, HW=HW, Cin=Cin, L=L, eps=eps)
    else:
        kernel = functools.partial(_conv_relu_kernel, K=K, pad=padding,
                                   W=W, HW=HW, Cin=Cin, L=L)

    # TODO(synk): for v7x with N == 1, add a second 'parallel' grid axis over
    # output-row tiles (with two-pass LN stats) so both TensorCores get work.
    out_flat = pl.pallas_call(
        kernel,
        grid=(N,),
        in_specs=in_specs,
        out_specs=pl.BlockSpec((1, Cout, HW), lambda n: (n, 0, 0)),
        out_shape=jax.ShapeDtypeStruct((N, Cout, HW), x_nchw.dtype),
        scratch_shapes=[
            pltpu.VMEM((Cin, L), x_nchw.dtype),    # zero-padded flat line buffer
            pltpu.VMEM((KKC, HW), x_nchw.dtype),   # fused im2col RHS
        ],
        compiler_params=pltpu.CompilerParams(dimension_semantics=("parallel",)),
    )(*args)

    # (N, Cout, H*W) is already NCHW-contiguous: this reshape is free.
    return out_flat.reshape(N, Cout, H, W)


# ---------------------------------------------------------------------------
# Pure-JAX reference (for correctness check only)
# ---------------------------------------------------------------------------
def conv_block_ref(x, w, b, *, padding=1, norm=False, ln_w=None, ln_b=None, eps=1e-5):
    out = jax.lax.conv_general_dilated(
        x, w, window_strides=(1, 1), padding=[(padding, padding)] * 2,
        dimension_numbers=("NCHW", "OIHW", "NCHW"),
        precision=jax.lax.Precision.HIGHEST)
    out = out + b[None, :, None, None]
    if norm:
        mean = out.mean(axis=(1, 2, 3), keepdims=True)
        var = ((out - mean) ** 2).mean(axis=(1, 2, 3), keepdims=True)
        out = (out - mean) * jax.lax.rsqrt(var + eps)
        out = out * ln_w[None] + ln_b[None]
    return jnp.maximum(out, 0.0)


# ---------------------------------------------------------------------------
if __name__ == "__main__":
    key = jax.random.PRNGKey(0)
    k_x1, k_x2, k_w, k_b, k_g, k_beta = jax.random.split(key, 6)

    Cin, Cout, K, pad = 4, 8, 3, 1

    # Deterministic synthetic parameters (PyTorch-like uniform fan-in init).
    fan_in = Cin * K * K
    bound = 1.0 / (fan_in ** 0.5)
    conv_w = jax.random.uniform(k_w, (Cout, Cin, K, K), jnp.float32, -bound, bound)
    conv_b = jax.random.uniform(k_b, (Cout,), jnp.float32, -bound, bound)

    # ---- Case 1: norm=False, small spatial (16x16) -------------------------
    x1 = jax.random.normal(k_x1, (2, Cin, 16, 16), jnp.float32)
    y1 = jax.block_until_ready(conv_block(x1, conv_w, conv_b, padding=pad, norm=False))
    y1_ref = conv_block_ref(x1, conv_w, conv_b, padding=pad, norm=False)
    assert y1.shape == (2, Cout, 16, 16)
    assert jnp.allclose(y1, y1_ref, atol=1e-4, rtol=1e-4)

    # ---- Case 2: norm=True (LayerNorm over [Cout, 64, 64]) -----------------
    ln_w = 1.0 + 0.1 * jax.random.normal(k_g, (Cout, 64, 64), jnp.float32)
    ln_b = 0.1 * jax.random.normal(k_beta, (Cout, 64, 64), jnp.float32)
    x2 = jax.random.normal(k_x2, (2, Cin, 64, 64), jnp.float32)
    y2 = jax.block_until_ready(conv_block(x2, conv_w, conv_b, padding=pad,
                                          norm=True, ln_weight=ln_w, ln_bias=ln_b))
    y2_ref = conv_block_ref(x2, conv_w, conv_b, padding=pad, norm=True,
                            ln_w=ln_w, ln_b=ln_b)
    assert y2.shape == (2, Cout, 64, 64)
    assert jnp.allclose(y2, y2_ref, atol=1e-4, rtol=1e-4)

    print("KERNEL_OK")
</pallas_src>

<mosaic_0001>
module attributes {stable_mosaic.version = 11 : i64} {
  func.func @_conv_relu_kernel(%arg0: i32, %arg1: memref<1x4x256xf32, #tpu.memory_space<vmem>>, %arg2: memref<1x256xi32, #tpu.memory_space<vmem>>, %arg3: memref<8x36xf32, #tpu.memory_space<vmem>>, %arg4: memref<8x1xf32, #tpu.memory_space<vmem>>, %arg5: memref<1x8x256xf32, #tpu.memory_space<vmem>>, %arg6: memref<4x384xf32, #tpu.memory_space<vmem>>, %arg7: memref<36x256xf32, #tpu.memory_space<vmem>>) attributes {dimension_semantics = [#tpu.dimension_semantics<parallel>], iteration_bounds = array<i64: 2>, scalar_prefetch = 0 : i64, scratch_operands = 2 : i64, tpu.core_type = #tpu.core_type<tc>, window_params = [{transform_indices = @transform_0, window_bounds = array<i64: 1, 4, 256>}, {pipeline_mode = #tpu.pipeline_mode<synchronous>, transform_indices = @transform_1, window_bounds = array<i64: 1, 256>}, {pipeline_mode = #tpu.pipeline_mode<synchronous>, transform_indices = @transform_2, window_bounds = array<i64: 8, 36>}, {pipeline_mode = #tpu.pipeline_mode<synchronous>, transform_indices = @transform_3, window_bounds = array<i64: 8, 1>}, {transform_indices = @transform_4, window_bounds = array<i64: 1, 8, 256>}]} {
    %cst = arith.constant 0.000000e+00 : f32
    %0 = vector.broadcast %cst : f32 to vector<4x384xf32>
    %c0 = arith.constant 0 : index
    %c0_0 = arith.constant 0 : index
    %1 = vector.load %arg6[%c0, %c0_0] : memref<4x384xf32, #tpu.memory_space<vmem>>, vector<4x384xf32>
    tpu.vector_store %arg6[%c0, %c0_0], %0 {strides = array<i32>} : memref<4x384xf32, #tpu.memory_space<vmem>>, vector<4x384xf32>,
    %c0_1 = arith.constant 0 : index
    %c0_2 = arith.constant 0 : index
    %c0_3 = arith.constant 0 : index
    %2 = vector.load %arg1[%c0_1, %c0_2, %c0_3] : memref<1x4x256xf32, #tpu.memory_space<vmem>>, vector<1x4x256xf32>
    %3 = vector.shape_cast %2 : vector<1x4x256xf32> to vector<4x256xf32>
    %c0_4 = arith.constant 0 : index
    %c17 = arith.constant 17 : index
    %4 = vector.load %arg6[%c0_4, %c17] : memref<4x384xf32, #tpu.memory_space<vmem>>, vector<4x256xf32>
    tpu.vector_store %arg6[%c0_4, %c17], %3 {strides = array<i32>} : memref<4x384xf32, #tpu.memory_space<vmem>>, vector<4x256xf32>,
    %c0_5 = arith.constant 0 : index
    %c0_6 = arith.constant 0 : index
    %5 = vector.load %arg2[%c0_5, %c0_6] : memref<1x256xi32, #tpu.memory_space<vmem>>, vector<1x256xi32>
    %c1_i32 = arith.constant 1 : i32
    %6 = vector.broadcast %c1_i32 : i32 to vector<1x256xi32>
    %7 = arith.cmpi sge, %5, %6 : vector<1x256xi32>
    %c15_i32 = arith.constant 15 : i32
    %8 = vector.broadcast %c15_i32 : i32 to vector<1x256xi32>
    %9 = arith.cmpi slt, %5, %8 : vector<1x256xi32>
    %c0_7 = arith.constant 0 : index
    %c0_8 = arith.constant 0 : index
    %10 = vector.load %arg6[%c0_7, %c0_8] : memref<4x384xf32, #tpu.memory_space<vmem>>, vector<4x256xf32>
    %c0_i32 = arith.constant 0 : i32
    %11 = arith.sitofp %c0_i32 : i32 to f32
    %12 = vector.shape_cast %7 : vector<1x256xi1> to vector<1x256xi1>
    %13 = vector.broadcast %12 : vector<1x256xi1> to vector<4x256xi1>
    %14 = vector.broadcast %11 : f32 to vector<4x256xf32>
    %15 = arith.select %13, %10, %14 : vector<4x256xi1>, vector<4x256xf32>
    %c0_9 = arith.constant 0 : index
    %c0_10 = arith.constant 0 : index
    %16 = vector.load %arg7[%c0_9, %c0_10] : memref<36x256xf32, #tpu.memory_space<vmem>>, vector<4x256xf32>
    tpu.vector_store %arg7[%c0_9, %c0_10], %15 {strides = array<i32>} : memref<36x256xf32, #tpu.memory_space<vmem>>, vector<4x256xf32>,
    %c0_11 = arith.constant 0 : index
    %c1 = arith.constant 1 : index
    %17 = vector.load %arg6[%c0_11, %c1] : memref<4x384xf32, #tpu.memory_space<vmem>>, vector<4x256xf32>
    %c4 = arith.constant 4 : index
    %c0_12 = arith.constant 0 : index
    %18 = vector.load %arg7[%c4, %c0_12] : memref<36x256xf32, #tpu.memory_space<vmem>>, vector<4x256xf32>
    tpu.vector_store %arg7[%c4, %c0_12], %17 {strides = array<i32>} : memref<36x256xf32, #tpu.memory_space<vmem>>, vector<4x256xf32>,
    %c0_13 = arith.constant 0 : index
    %c2 = arith.constant 2 : index
    %19 = vector.load %arg6[%c0_13, %c2] : memref<4x384xf32, #tpu.memory_space<vmem>>, vector<4x256xf32>
    %c0_i32_14 = arith.constant 0 : i32
    %20 = arith.sitofp %c0_i32_14 : i32 to f32
    %21 = vector.shape_cast %9 : vector<1x256xi1> to vector<1x256xi1>
    %22 = vector.broadcast %21 : vector<1x256xi1> to vector<4x256xi1>
    %23 = vector.broadcast %20 : f32 to vector<4x256xf32>
    %24 = arith.select %22, %19, %23 : vector<4x256xi1>, vector<4x256xf32>
    %c8 = arith.constant 8 : index
    %c0_15 = arith.constant 0 : index
    %25 = vector.load %arg7[%c8, %c0_15] : memref<36x256xf32, #tpu.memory_space<vmem>>, vector<4x256xf32>
    tpu.vector_store %arg7[%c8, %c0_15], %24 {strides = array<i32>} : memref<36x256xf32, #tpu.memory_space<vmem>>, vector<4x256xf32>,
    %c0_16 = arith.constant 0 : index
    %c16 = arith.constant 16 : index
    %26 = vector.load %arg6[%c0_16, %c16] : memref<4x384xf32, #tpu.memory_space<vmem>>, vector<4x256xf32>
    %c0_i32_17 = arith.constant 0 : i32
    %27 = arith.sitofp %c0_i32_17 : i32 to f32
    %28 = vector.shape_cast %7 : vector<1x256xi1> to vector<1x256xi1>
    %29 = vector.broadcast %28 : vector<1x256xi1> to vector<4x256xi1>
    %30 = vector.broadcast %27 : f32 to vector<4x256xf32>
    %31 = arith.select %29, %26, %30 : vector<4x256xi1>, vector<4x256xf32>
    %c12 = arith.constant 12 : index
    %c0_18 = arith.constant 0 : index
    %32 = vector.load %arg7[%c12, %c0_18] : memref<36x256xf32, #tpu.memory_space<vmem>>, vector<4x256xf32>
    tpu.vector_store %arg7[%c12, %c0_18], %31 {strides = array<i32>} : memref<36x256xf32, #tpu.memory_space<vmem>>, vector<4x256xf32>,
    %c0_19 = arith.constant 0 : index
    %c17_20 = arith.constant 17 : index
    %33 = vector.load %arg6[%c0_19, %c17_20] : memref<4x384xf32, #tpu.memory_space<vmem>>, vector<4x256xf32>
    %c16_21 = arith.constant 16 : index
    %c0_22 = arith.constant 0 : index
    %34 = vector.load %arg7[%c16_21, %c0_22] : memref<36x256xf32, #tpu.memory_space<vmem>>, vector<4x256xf32>
    tpu.vector_store %arg7[%c16_21, %c0_22], %33 {strides = array<i32>} : memref<36x256xf32, #tpu.memory_space<vmem>>, vector<4x256xf32>,
    %c0_23 = arith.constant 0 : index
    %c18 = arith.constant 18 : index
    %35 = vector.load %arg6[%c0_23, %c18] : memref<4x384xf32, #tpu.memory_space<vmem>>, vector<4x256xf32>
    %c0_i32_24 = arith.constant 0 : i32
    %36 = arith.sitofp %c0_i32_24 : i32 to f32
    %37 = vector.shape_cast %9 : vector<1x256xi1> to vector<1x256xi1>
    %38 = vector.broadcast %37 : vector<1x256xi1> to vector<4x256xi1>
    %39 = vector.broadcast %36 : f32 to vector<4x256xf32>
    %40 = arith.select %38, %35, %39 : vector<4x256xi1>, vector<4x256xf32>
    %c20 = arith.constant 20 : index
    %c0_25 = arith.constant 0 : index
    %41 = vector.load %arg7[%c20, %c0_25] : memref<36x256xf32, #tpu.memory_space<vmem>>, vector<4x256xf32>
    tpu.vector_store %arg7[%c20, %c0_25], %40 {strides = array<i32>} : memref<36x256xf32, #tpu.memory_space<vmem>>, vector<4x256xf32>,
    %c0_26 = arith.constant 0 : index
    %c32 = arith.constant 32 : index
    %42 = vector.load %arg6[%c0_26, %c32] : memref<4x384xf32, #tpu.memory_space<vmem>>, vector<4x256xf32>
    %c0_i32_27 = arith.constant 0 : i32
    %43 = arith.sitofp %c0_i32_27 : i32 to f32
    %44 = vector.shape_cast %7 : vector<1x256xi1> to vector<1x256xi1>
    %45 = vector.broadcast %44 : vector<1x256xi1> to vector<4x256xi1>
    %46 = vector.broadcast %43 : f32 to vector<4x256xf32>
    %47 = arith.select %45, %42, %46 : vector<4x256xi1>, vector<4x256xf32>
    %c24 = arith.constant 24 : index
    %c0_28 = arith.constant 0 : index
    %48 = vector.load %arg7[%c24, %c0_28] : memref<36x256xf32, #tpu.memory_space<vmem>>, vector<4x256xf32>
    tpu.vector_store %arg7[%c24, %c0_28], %47 {strides = array<i32>} : memref<36x256xf32, #tpu.memory_space<vmem>>, vector<4x256xf32>,
    %c0_29 = arith.constant 0 : index
    %c33 = arith.constant 33 : index
    %49 = vector.load %arg6[%c0_29, %c33] : memref<4x384xf32, #tpu.memory_space<vmem>>, vector<4x256xf32>
    %c28 = arith.constant 28 : index
    %c0_30 = arith.constant 0 : index
    %50 = vector.load %arg7[%c28, %c0_30] : memref<36x256xf32, #tpu.memory_space<vmem>>, vector<4x256xf32>
    tpu.vector_store %arg7[%c28, %c0_30], %49 {strides = array<i32>} : memref<36x256xf32, #tpu.memory_space<vmem>>, vector<4x256xf32>,
    %c0_31 = arith.constant 0 : index
    %c34 = arith.constant 34 : index
    %51 = vector.load %arg6[%c0_31, %c34] : memref<4x384xf32, #tpu.memory_space<vmem>>, vector<4x256xf32>
    %c0_i32_32 = arith.constant 0 : i32
    %52 = arith.sitofp %c0_i32_32 : i32 to f32
    %53 = vector.shape_cast %9 : vector<1x256xi1> to vector<1x256xi1>
    %54 = vector.broadcast %53 : vector<1x256xi1> to vector<4x256xi1>
    %55 = vector.broadcast %52 : f32 to vector<4x256xf32>
    %56 = arith.select %54, %51, %55 : vector<4x256xi1>, vector<4x256xf32>
    %c32_33 = arith.constant 32 : index
    %c0_34 = arith.constant 0 : index
    %57 = vector.load %arg7[%c32_33, %c0_34] : memref<36x256xf32, #tpu.memory_space<vmem>>, vector<4x256xf32>
    tpu.vector_store %arg7[%c32_33, %c0_34], %56 {strides = array<i32>} : memref<36x256xf32, #tpu.memory_space<vmem>>, vector<4x256xf32>,
    %c0_35 = arith.constant 0 : index
    %c0_36 = arith.constant 0 : index
    %58 = vector.load %arg3[%c0_35, %c0_36] : memref<8x36xf32, #tpu.memory_space<vmem>>, vector<8x36xf32>
    %c0_37 = arith.constant 0 : index
    %c0_38 = arith.constant 0 : index
    %59 = vector.load %arg7[%c0_37, %c0_38] : memref<36x256xf32, #tpu.memory_space<vmem>>, vector<36x256xf32>
    %cst_39 = arith.constant dense<0.000000e+00> : vector<8x256xf32>
    %60 = tpu.matmul %58, %59, %cst_39 {dimension_numbers = #tpu.dot_dimension_numbers<[1], [0], [0], [1], [0, 0, 1, 1], [], []>} : vector<8x36xf32>, vector<36x256xf32>, vector<8x256xf32> -> vector<8x256xf32>
    %c0_40 = arith.constant 0 : index
    %c0_41 = arith.constant 0 : index
    %61 = vector.load %arg4[%c0_40, %c0_41] : memref<8x1xf32, #tpu.memory_space<vmem>>, vector<8x1xf32>
    %62 = vector.broadcast %61 : vector<8x1xf32> to vector<8x256xf32>
    %63 = arith.addf %60, %62 : vector<8x256xf32>
    %cst_42 = arith.constant 0.000000e+00 : f32
    %64 = vector.broadcast %cst_42 : f32 to vector<8x256xf32>
    %65 = arith.maximumf %63, %64 : vector<8x256xf32>
    %c0_43 = arith.constant 0 : index
    %c0_44 = arith.constant 0 : index
    %c0_45 = arith.constant 0 : index
    %66 = vector.load %arg5[%c0_43, %c0_44, %c0_45] : memref<1x8x256xf32, #tpu.memory_space<vmem>>, vector<1x8x256xf32>
    %67 = vector.shape_cast %66 : vector<1x8x256xf32> to vector<8x256xf32>
    %68 = vector.shape_cast %65 : vector<8x256xf32> to vector<1x8x256xf32>
    tpu.vector_store %arg5[%c0_43, %c0_44, %c0_45], %68 {strides = array<i32>} : memref<1x8x256xf32, #tpu.memory_space<vmem>>, vector<1x8x256xf32>,
    return
  }
  func.func @transform_0(%arg0: i32) -> (i32, i32, i32) {
    %c0_i32 = arith.constant 0 : i32
    %c0_i32_0 = arith.constant 0 : i32
    %c0_i32_1 = arith.constant 0 : i32
    return %arg0, %c0_i32, %c0_i32_0 : i32, i32, i32
  }
  func.func @transform_1(%arg0: i32) -> (i32, i32) {
    %c0_i32 = arith.constant 0 : i32
    %c0_i32_0 = arith.constant 0 : i32
    %c0_i32_1 = arith.constant 0 : i32
    return %c0_i32, %c0_i32_0 : i32, i32
  }
  func.func @transform_2(%arg0: i32) -> (i32, i32) {
    %c0_i32 = arith.constant 0 : i32
    %c0_i32_0 = arith.constant 0 : i32
    %c0_i32_1 = arith.constant 0 : i32
    return %c0_i32, %c0_i32_0 : i32, i32
  }
  func.func @transform_3(%arg0: i32) -> (i32, i32) {
    %c0_i32 = arith.constant 0 : i32
    %c0_i32_0 = arith.constant 0 : i32
    %c0_i32_1 = arith.constant 0 : i32
    return %c0_i32, %c0_i32_0 : i32, i32
  }
  func.func @transform_4(%arg0: i32) -> (i32, i32, i32) {
    %c0_i32 = arith.constant 0 : i32
    %c0_i32_0 = arith.constant 0 : i32
    %c0_i32_1 = arith.constant 0 : i32
    return %arg0, %c0_i32, %c0_i32_0 : i32, i32, i32
  }
}

</mosaic_0001>

<llo_original>
// kernel: tpu_custom_call.1
$region0: #{tpu_custom_call.1}
  #allocation0 [shape = 'u32[]', space=smem, size = 0x4, offset = 0x4, fixed_abs, tag = 'smem constant byte address 0x4 - core index']
  #allocation1 [shape = 'u32[72,128]{1,0:T(1,128)}', space=vmem, size = 0x9000, scoped, tag = 'internal scratch']
  #allocation2 [shape = 'f32[4,384]{1,0:T(4,128)}', space=vmem, size = 0x1800, scoped, tag = 'scratch operand']
  #allocation3 [shape = 'f32[36,256]{1,0:T(8,128)}', space=vmem, size = 0xa000, scoped, tag = 'scratch operand']
  %s0 = inlined_call_operand.hbm [shape: f32[2,4,256], index: 0, kind: input, shape index: {}]
  %s1 = inlined_call_operand.hbm [shape: s32[1,256], index: 1, kind: input, shape index: {}]
  %s2 = inlined_call_operand.vmem [shape: f32[8,36], index: 2, kind: input, shape index: {}]
  %s3 = inlined_call_operand.vmem [shape: f32[8,1], index: 3, kind: input, shape index: {}]
  %s4 = inlined_call_operand.hbm [shape: f32[2,8,256], index: 4, kind: output, shape index: {}]
  %s5 = sld [smem:[#allocation0]]
  $region57: #{tpu_custom_call.1} parent=0
    _
  %s7 = ssub.s32 1, %s5
  %s8 = scalar_select 0, %s7, %s5
  $region1: #{tpu_custom_call.1} parent=0
    #allocation4 [shape = 'u8[8192]{0}', space=vmem, size = 0x2000, scoped, tag = 'input window, operand 0']
    #allocation5 [shape = 's32[2]{0}', space=sflag, size = 0x8, scoped, tag = 'scoped memory for tpu_custom_call.1']
    #allocation6 [shape = 's32[2]{0}', space=sflag, size = 0x8, scoped, tag = 'scoped memory for tpu_custom_call.1']
    #allocation7 [shape = 'u8[1024]{0}', space=vmem, size = 0x400, scoped, tag = 'input window, operand 1, single buffered']
    #allocation8 [shape = 's32[1]{0}', space=sflag, size = 0x4, scoped, tag = 'scoped memory for tpu_custom_call.1']
    #allocation9 [shape = 'u8[16384]{0}', space=vmem, size = 0x4000, scoped, tag = 'output window, operand 0']
    %9 = vsyncpa [#allocation5], 0
    %s10 = scalar_lea.sflag [#allocation5], 1
    %11 = vsyncpa %s10, 0
    %12 = vsyncpa [#allocation8], 0
    %13 = vsyncpa [#allocation6], 0
    %s14 = scalar_lea.sflag [#allocation6], 1
    %15 = vsyncpa %s14, 0
    loop: start=0, step=1, limit=4
    $region2: #{tpu_custom_call.1} parent=1 // loop_pre_header
      _
    $region3: #{tpu_custom_call.1} parent=1 // loop_header
      %s17 = sphi 0, %s21
      %p18 = scmp.ge.s32.totalorder %s17, 4
      %s27 = sphi 0, %s29
      %s30 = sphi 0, %s27
      %s31 = sphi 0, %s30
      %s47 = sphi 0, %s31
      %s51 = sphi 0, %s51
      %s53 = sphi 0, %s51
      %s54 = sphi 0, %s53
      %s68 = sphi 0, %s54
      %s72 = sphi 0, %s72
      %s74 = sphi 0, %s72
      %s75 = sphi 0, %s74
      %s89 = sphi 0, %s75
      %s93 = sphi 0, %s93
      %s95 = sphi 0, %s93
      %s96 = sphi 0, %s95
      %s110 = sphi 0, %s96
      %s116 = sphi 0, %s118
      %s119 = sphi 0, %s116
      %s120 = sphi 0, %s119
      %s136 = sphi 0, %s120
    $region4: #{tpu_custom_call.1} parent=1 // loop_header_branch
      %20 = sbr.rel (%p18) target = $region8
    $region5: #{tpu_custom_call.1} parent=1 // loop_body
      %s22 = ssub.s32 %s17, 1
      %s23 = ssub.s32 %s17, 2
      %s24 = sadd.s32 %s17, 1
      %s25 = ssub.s32 %s17, %s24
      %p26 = scmp.eq.s32.totalorder %s25, 0
      %s28 = sadd.s32 %s27, 1
      %s29 = scalar_select %p26, %s27, %s28
      %p32 = pneg %p26
      %p33 = scmp.eq.s32.totalorder %s17, 1
      %p34 = por %p32, %p33
      %p35 = scmp.ne.s32.totalorder %s27, %s30
      %p36 = scmp.eq.s32.totalorder %s17, 0
      %p37 = por %p35, %p36
      %p38 = scmp.ne.s32.totalorder %s27, %s30
      %p39 = scmp.eq.s32.totalorder %s22, 1
      %p40 = por %p38, %p39
      %p41 = scmp.ne.s32.totalorder %s30, %s31
      %p42 = scmp.eq.s32.totalorder %s22, 0
      %p43 = por %p41, %p42
      %p44 = scmp.ne.s32.totalorder %s30, %s31
      %p45 = scmp.eq.s32.totalorder %s23, 1
      %p46 = por %p44, %p45
      %p48 = scmp.ne.s32.totalorder %s31, %s47
      %p49 = scmp.eq.s32.totalorder %s23, 0
      %p50 = por %p48, %p49
      %s52 = sadd.s32 %s51, 1
      %p55 = scmp.eq.s32.totalorder %s17, 1
      %p56 = scmp.ne.s32.totalorder %s51, %s53
      %p57 = scmp.eq.s32.totalorder %s17, 0
      %p58 = por %p56, %p57
      %p59 = scmp.ne.s32.totalorder %s51, %s53
      %p60 = scmp.eq.s32.totalorder %s22, 1
      %p61 = por %p59, %p60
      %p62 = scmp.ne.s32.totalorder %s53, %s54
      %p63 = scmp.eq.s32.totalorder %s22, 0
      %p64 = por %p62, %p63
      %p65 = scmp.ne.s32.totalorder %s53, %s54
      %p66 = scmp.eq.s32.totalorder %s23, 1
      %p67 = por %p65, %p66
      %p69 = scmp.ne.s32.totalorder %s54, %s68
      %p70 = scmp.eq.s32.totalorder %s23, 0
      %p71 = por %p69, %p70
      %s73 = sadd.s32 %s72, 1
      %p76 = scmp.eq.s32.totalorder %s17, 1
      %p77 = scmp.ne.s32.totalorder %s72, %s74
      %p78 = scmp.eq.s32.totalorder %s17, 0
      %p79 = por %p77, %p78
      %p80 = scmp.ne.s32.totalorder %s72, %s74
      %p81 = scmp.eq.s32.totalorder %s22, 1
      %p82 = por %p80, %p81
      %p83 = scmp.ne.s32.totalorder %s74, %s75
      %p84 = scmp.eq.s32.totalorder %s22, 0
      %p85 = por %p83, %p84
      %p86 = scmp.ne.s32.totalorder %s74, %s75
      %p87 = scmp.eq.s32.totalorder %s23, 1
      %p88 = por %p86, %p87
      %p90 = scmp.ne.s32.totalorder %s75, %s89
      %p91 = scmp.eq.s32.totalorder %s23, 0
      %p92 = por %p90, %p91
      %s94 = sadd.s32 %s93, 1
      %p97 = scmp.eq.s32.totalorder %s17, 1
      %p98 = scmp.ne.s32.totalorder %s93, %s95
      %p99 = scmp.eq.s32.totalorder %s17, 0
      %p100 = por %p98, %p99
      %p101 = scmp.ne.s32.totalorder %s93, %s95
      %p102 = scmp.eq.s32.totalorder %s22, 1
      %p103 = por %p101, %p102
      %p104 = scmp.ne.s32.totalorder %s95, %s96
      %p105 = scmp.eq.s32.totalorder %s22, 0
      %p106 = por %p104, %p105
      %p107 = scmp.ne.s32.totalorder %s95, %s96
      %p108 = scmp.eq.s32.totalorder %s23, 1
      %p109 = por %p107, %p108
      %p111 = scmp.ne.s32.totalorder %s96, %s110
      %p112 = scmp.eq.s32.totalorder %s23, 0
      %p113 = por %p111, %p112
      %s114 = ssub.s32 %s17, %s24
      %p115 = scmp.eq.s32.totalorder %s114, 0
      %s117 = sadd.s32 %s116, 1
      %s118 = scalar_select %p115, %s116, %s117
      %p121 = pneg %p115
      %p122 = scmp.eq.s32.totalorder %s17, 1
      %p123 = por %p121, %p122
      %p124 = scmp.ne.s32.totalorder %s116, %s119
      %p125 = scmp.eq.s32.totalorder %s17, 0
      %p126 = por %p124, %p125
      %p127 = scmp.ne.s32.totalorder %s116, %s119
      %p128 = scmp.eq.s32.totalorder %s22, 1
      %p129 = por %p127, %p128
      %p130 = scmp.ne.s32.totalorder %s119, %s120
      %p131 = scmp.eq.s32.totalorder %s22, 0
      %p132 = por %p130, %p131
      %p133 = scmp.ne.s32.totalorder %s119, %s120
      %p134 = scmp.eq.s32.totalorder %s23, 1
      %p135 = por %p133, %p134
      %p137 = scmp.ne.s32.totalorder %s120, %s136
      %p138 = scmp.eq.s32.totalorder %s23, 0
      %p139 = por %p137, %p138
      %p140 = scmp.le.s32.totalorder 1, %s17
      %p141 = scmp.lt.s32.totalorder %s17, 3
      %p142 = pnand %p140, %p141
      %p143 = pneg %p142
      // Predicated region
      $region9: #{tpu_custom_call.1} parent=5 // pred_check
        _
      $region10: #{tpu_custom_call.1} parent=5 // pred_check_branch
        %145 = sbr.rel (%p142) target = $region12
      $region11: #{tpu_custom_call.1} parent=5 // pred_region
        %s146 = ssub.s32 %s17, 1
        // Predicated region
        $region13: #{tpu_custom_call.1} parent=11 // pred_check
          %p147 = pneg %p64
        $region14: #{tpu_custom_call.1} parent=11 // pred_check_branch
          %149 = sbr.rel (%p147) target = $region16
        $region15: #{tpu_custom_call.1} parent=11 // pred_region
          %151 = vsyncadd [#allocation8], 0
          %s153 = sshll.u32 %s1, 4
          %s154 = int_to_ptr.hbm [resolvable:$true] %s153
          %s155 = sshll.u32 [#allocation7], 4
          %s156 = int_to_ptr.vmem [resolvable:$true] %s155
          %158 = dma.hbm_to_vmem [thread:$0]  %s154, 32, %s156, [#allocation8]
        $region16: #{tpu_custom_call.1} parent=11 // pred_fallthru
          _
        // Predicated region
        $region17: #{tpu_custom_call.1} parent=11 // pred_check
          %p159 = pneg %p85
        $region18: #{tpu_custom_call.1} parent=11 // pred_check_branch
          %161 = sbr.rel (%p159) target = $region20
        $region19: #{tpu_custom_call.1} parent=11 // pred_region
          _
        $region20: #{tpu_custom_call.1} parent=11 // pred_fallthru
          _
        // Predicated region
        $region21: #{tpu_custom_call.1} parent=11 // pred_check
          %p162 = pneg %p106
        $region22: #{tpu_custom_call.1} parent=11 // pred_check_branch
          %164 = sbr.rel (%p162) target = $region24
        $region23: #{tpu_custom_call.1} parent=11 // pred_region
          _
        $region24: #{tpu_custom_call.1} parent=11 // pred_fallthru
          _
      $region12: #{tpu_custom_call.1} parent=5 // pred_fallthru
        _
      %p165 = scmp.lt.s32.totalorder %s17, 2
      // Predicated region
      $region25: #{tpu_custom_call.1} parent=5 // pred_check
        %p166 = pneg %p165
      $region26: #{tpu_custom_call.1} parent=5 // pred_check_branch
        %168 = sbr.rel (%p166) target = $region28
      $region27: #{tpu_custom_call.1} parent=5 // pred_region
        // Predicated region
        $region29: #{tpu_custom_call.1} parent=27 // pred_check
          %p169 = pneg %p37
        $region30: #{tpu_custom_call.1} parent=27 // pred_check_branch
          %171 = sbr.rel (%p169) target = $region32
        $region31: #{tpu_custom_call.1} parent=27 // pred_region
          %s172 = sand.u32 %s27, 1
          %s173 = scalar_lea.sflag [#allocation5], %s172
          %s174 = sand.u32 %s27, 1
          %s175 = smul.addr %s174, 8
          %s176 = scalar_lea.vmem [#allocation4], %s175
          %178 = vsyncadd %s173, 0
          %s179 = smul.addr %s17, 2
          %s180 = smul.addr %s179, 4
          %s181 = scalar_lea.hbm %s0, %s180
          %s183 = sshll.u32 %s181, 4
          %s184 = int_to_ptr.hbm [resolvable:$true] %s183
          %s185 = sshll.u32 %s176, 4
          %s186 = int_to_ptr.vmem [resolvable:$true] %s185
          %188 = dma.hbm_to_vmem [thread:$0]  %s184, 128, %s186, %s173
        $region32: #{tpu_custom_call.1} parent=27 // pred_fallthru
          _
      $region28: #{tpu_custom_call.1} parent=5 // pred_fallthru
        _
      %p189 = scmp.le.s32.totalorder 1, %s17
      %p190 = scmp.lt.s32.totalorder %s17, 3
      %p191 = pnand %p189, %p190
      %p192 = pneg %p191
      // Predicated region
      $region33: #{tpu_custom_call.1} parent=5 // pred_check
        _
      $region34: #{tpu_custom_call.1} parent=5 // pred_check_branch
        %194 = sbr.rel (%p191) target = $region36
      $region35: #{tpu_custom_call.1} parent=5 // pred_region
        %s195 = ssub.s32 %s17, 1
        %s196 = sand.u32 %s30, 1
        %s197 = scalar_lea.sflag [#allocation5], %s196
        %s198 = sand.u32 %s30, 1
        %s199 = smul.addr %s198, 8
        %s200 = scalar_lea.vmem [#allocation4], %s199
        // Predicated region
        $region37: #{tpu_custom_call.1} parent=35 // pred_check
          %p201 = pneg %p43
        $region38: #{tpu_custom_call.1} parent=35 // pred_check_branch
          %203 = sbr.rel (%p201) target = $region40
        $region39: #{tpu_custom_call.1} parent=35 // pred_region
          %205 = dma.done %s197, 128
        $region40: #{tpu_custom_call.1} parent=35 // pred_fallthru
          _
        // Predicated region
        $region41: #{tpu_custom_call.1} parent=35 // pred_check
          %p206 = pneg %p64
        $region42: #{tpu_custom_call.1} parent=35 // pred_check_branch
          %208 = sbr.rel (%p206) target = $region44
        $region43: #{tpu_custom_call.1} parent=35 // pred_region
          %210 = dma.done [#allocation8], 32
        $region44: #{tpu_custom_call.1} parent=35 // pred_fallthru
          _
        %s211 = sand.u32 %s30, 1
        %s212 = scalar_lea.sflag [#allocation5], %s211
        %s213 = sand.u32 %s30, 1
        %s214 = smul.addr %s213, 8
        %s215 = scalar_lea.vmem [#allocation4], %s214
        %p216 = pneg %p43
        %p217 = pneg %p40
        %p218 = pneg %p64
        %p219 = pneg %p61
        %p220 = pneg %p85
        %p221 = pneg %p82
        %p222 = pneg %p106
        %p223 = pneg %p103
        %p224 = pneg %p132
        %p225 = pneg %p129
        %s226 = sand.u32 %s119, 1
        %s227 = scalar_lea.sflag [#allocation6], %s226
        %s228 = sand.u32 %s119, 1
        %s229 = smul.addr %s228, 16
        %s230 = scalar_lea.vmem [#allocation9], %s229
        %231 = vst [vmem:[#allocation2] sm:$0xff] 0.0
        %232 = vst [vmem:[#allocation2 + $0x8] sm:$0xf] 0.0
        %v233 = vld [vmem:[%s200] sm:$0xff]
        %235 = vrot.lane.b32.xlu0 %v233, 17
        %v236 = vpop.permute.xlu0 %235
        %v237 = vrot.slane %v236, 4
        %vm238 = vcmask 138240
        %v239 = vsel %vm238, %v237, %v236
        %vm242 = vcmask 1043592
        %vm243 = vcmask 1047556
        %vm244 = vmor %vm243, %vm242
        %245 = vst.msk [vmem:[#allocation2] sm:$0xff] %vm244, %v239
        %vm246 = vcmask 134144
        %247 = vst.msk [vmem:[#allocation2 + $0x8] sm:$0xf] %vm246, %v237
        %v248 = vld [vmem:[#allocation7] sm:$0x3]
        %vm249 = vcmp.ge.s32.totalorder %v248, 1
        %vm250 = vcmp.lt.s32.totalorder %v248, 15
        %v251 = vld [vmem:[#allocation2] sm:$0xff]
        %v252 = vsel %vm249, 1, 0
        %v253 = vperm.slane %v252, 0
        %v254 = vperm.slane %v252, 1
        %vm255 = vcmp.eq.s32.totalorder %v253, 1
        %vm256 = vcmp.eq.s32.totalorder %v254, 1
        %258 = vst [vmem:[#allocation1] ss:$2 sm:$0xff] %v251
        %v259 = vld.sshfl [vmem:[#allocation1] sm:$0xff pattern:$0x75316420]
        %v260 = vld.sshfl [vmem:[#allocation1 + $0x8] sm:$0xff pattern:$0x75316420]
        %v263 = vsel %vm255, %v259, 0.0
        %v264 = vsel %vm256, %v260, 0.0
        %265 = vst [vmem:[#allocation3] sm:$0xf] %v263
        %266 = vst [vmem:[#allocation3 + $0x8] sm:$0xf] %v264
        %v267 = vld [vmem:[#allocation2] sm:$0xff]
        %v268 = vld [vmem:[#allocation2 + $0x8] sm:$0xf]
        %s271 = scalar_lea.vmem [#allocation1], 1
        %272 = vst [vmem:[%s271] ss:$2 sm:$0xff] %v267
        %s273 = scalar_lea.vmem [#allocation1], 17
        %274 = vst [vmem:[%s273] ss:$2 sm:$0xff] %v268
        %v275 = vld.sshfl [vmem:[#allocation1] sm:$0xff pattern:$0x75316420]
        %v276 = vld.sshfl [vmem:[#allocation1 + $0x8] sm:$0xff pattern:$0x75316420]
        %v277 = vld.sshfl [vmem:[#allocation1 + $0x10] sm:$0xff pattern:$0x75316420]
        %278 = vrot.lane.b32.xlu0 %v275, 127
        %v279 = vpop.permute.xlu0 %278
        %280 = vrot.lane.b32.xlu0 %v276, 127
        %v281 = vpop.permute.xlu0 %280
        %282 = vrot.lane.b32.xlu0 %v277, 127
        %v283 = vpop.permute.xlu0 %282
        %vm284 = vcmask 1039360
        %v285 = vsel %vm284, %v279, %v281
        %v286 = vsel %vm284, %v281, %v283
        %289 = vst [vmem:[#allocation3] sm:$0xf0] %v285
        %290 = vst [vmem:[#allocation3 + $0x8] sm:$0xf0] %v286
        %v291 = vld [vmem:[#allocation2] sm:$0xff]
        %v292 = vld [vmem:[#allocation2 + $0x8] sm:$0xf]
        %v293 = vsel %vm250, 1, 0
        %v294 = vperm.slane %v293, 0
        %v295 = vperm.slane %v293, 1
        %vm296 = vcmp.eq.s32.totalorder %v294, 1
        %vm297 = vcmp.eq.s32.totalorder %v295, 1
        %300 = vst [vmem:[#allocation1] ss:$2 sm:$0xff] %v291
        %s301 = scalar_lea.vmem [#allocation1], 16
        %302 = vst [vmem:[%s301] ss:$2 sm:$0xff] %v292
        %v303 = vld.sshfl [vmem:[#allocation1] sm:$0xff pattern:$0x75316420]
        %v304 = vld.sshfl [vmem:[#allocation1 + $0x8] sm:$0xff pattern:$0x75316420]
        %v305 = vld.sshfl [vmem:[#allocation1 + $0x10] sm:$0xff pattern:$0x75316420]
        %306 = vrot.lane.b32.xlu0 %v303, 126
        %v307 = vpop.permute.xlu0 %306
        %308 = vrot.lane.b32.xlu0 %v304, 126
        %v309 = vpop.permute.xlu0 %308
        %310 = vrot.lane.b32.xlu0 %v305, 126
        %v311 = vpop.permute.xlu0 %310
        %vm312 = vcmask 1031168
        %v313 = vsel %vm312, %v307, %v309
        %v314 = vsel %vm312, %v309, %v311
        %v317 = vsel %vm296, %v313, 0.0
        %v318 = vsel %vm297, %v314, 0.0
        %319 = vst [vmem:[#allocation3 + $0x10] sm:$0xf] %v317
        %320 = vst [vmem:[#allocation3 + $0x18] sm:$0xf] %v318
        %v321 = vld [vmem:[#allocation2] sm:$0xff]
        %v322 = vld [vmem:[#allocation2 + $0x8] sm:$0xf]
        %325 = vst [vmem:[#allocation1] ss:$2 sm:$0xff] %v321
        %s326 = scalar_lea.vmem [#allocation1], 16
        %327 = vst [vmem:[%s326] ss:$2 sm:$0xff] %v322
        %v328 = vld.sshfl [vmem:[#allocation1] sm:$0xff pattern:$0x75316420]
        %v329 = vld.sshfl [vmem:[#allocation1 + $0x8] sm:$0xff pattern:$0x75316420]
        %v330 = vld.sshfl [vmem:[#allocation1 + $0x10] sm:$0xff pattern:$0x75316420]
        %331 = vrot.lane.b32.xlu0 %v328, 112
        %v332 = vpop.permute.xlu0 %331
        %333 = vrot.lane.b32.xlu0 %v329, 112
        %v334 = vpop.permute.xlu0 %333
        %335 = vrot.lane.b32.xlu0 %v330, 112
        %v336 = vpop.permute.xlu0 %335
        %vm337 = vcmask 916480
        %v338 = vsel %vm337, %v332, %v334
        %v339 = vsel %vm337, %v334, %v336
        %v342 = vsel %vm255, %v338, 0.0
        %v343 = vsel %vm256, %v339, 0.0
        %v346 = vrot.slane %v342, 4
        %v347 = vrot.slane %v343, 4
        %350 = vst [vmem:[#allocation3 + $0x10] sm:$0xf0] %v346
        %351 = vst [vmem:[#allocation3 + $0x18] sm:$0xf0] %v347
        %v352 = vld [vmem:[#allocation2] sm:$0xff]
        %v353 = vld [vmem:[#allocation2 + $0x8] sm:$0xf]
        %356 = vst [vmem:[#allocation1] ss:$2 sm:$0xff] %v352
        %s357 = scalar_lea.vmem [#allocation1], 16
        %358 = vst [vmem:[%s357] ss:$2 sm:$0xff] %v353
        %v359 = vld.sshfl [vmem:[#allocation1] sm:$0xff pattern:$0x75316420]
        %v360 = vld.sshfl [vmem:[#allocation1 + $0x8] sm:$0xff pattern:$0x75316420]
        %v361 = vld.sshfl [vmem:[#allocation1 + $0x10] sm:$0xff pattern:$0x75316420]
        %362 = vrot.lane.b32.xlu0 %v359, 111
        %v363 = vpop.permute.xlu0 %362
        %364 = vrot.lane.b32.xlu0 %v360, 111
        %v365 = vpop.permute.xlu0 %364
        %366 = vrot.lane.b32.xlu0 %v361, 111
        %v367 = vpop.permute.xlu0 %366
        %vm368 = vcmask 908288
        %v369 = vsel %vm368, %v363, %v365
        %v370 = vsel %vm368, %v365, %v367
        %373 = vst [vmem:[#allocation3 + $0x20] sm:$0xf] %v369
        %374 = vst [vmem:[#allocation3 + $0x28] sm:$0xf] %v370
        %v375 = vld [vmem:[#allocation2] sm:$0xff]
        %v376 = vld [vmem:[#allocation2 + $0x8] sm:$0xf]
        %379 = vst [vmem:[#allocation1] ss:$2 sm:$0xff] %v375
        %s380 = scalar_lea.vmem [#allocation1], 16
        %381 = vst [vmem:[%s380] ss:$2 sm:$0xff] %v376
        %v382 = vld.sshfl [vmem:[#allocation1] sm:$0xff pattern:$0x75316420]
        %v383 = vld.sshfl [vmem:[#allocation1 + $0x8] sm:$0xff pattern:$0x75316420]
        %v384 = vld.sshfl [vmem:[#allocation1 + $0x10] sm:$0xff pattern:$0x75316420]
        %385 = vrot.lane.b32.xlu0 %v382, 110
        %v386 = vpop.permute.xlu0 %385
        %387 = vrot.lane.b32.xlu0 %v383, 110
        %v388 = vpop.permute.xlu0 %387
        %389 = vrot.lane.b32.xlu0 %v384, 110
        %v390 = vpop.permute.xlu0 %389
        %vm391 = vcmask 900096
        %v392 = vsel %vm391, %v386, %v388
        %v393 = vsel %vm391, %v388, %v390
        %v396 = vsel %vm296, %v392, 0.0
        %v397 = vsel %vm297, %v393, 0.0
        %v400 = vrot.slane %v396, 4
        %v401 = vrot.slane %v397, 4
        %404 = vst [vmem:[#allocation3 + $0x20] sm:$0xf0] %v400
        %405 = vst [vmem:[#allocation3 + $0x28] sm:$0xf0] %v401
        %v406 = vld [vmem:[#allocation2] sm:$0xff]
        %v407 = vld [vmem:[#allocation2 + $0x8] sm:$0xf]
        %410 = vst [vmem:[#allocation1] ss:$2 sm:$0xff] %v406
        %s411 = scalar_lea.vmem [#allocation1], 16
        %412 = vst [vmem:[%s411] ss:$2 sm:$0xff] %v407
        %v413 = vld.sshfl [vmem:[#allocation1] sm:$0xff pattern:$0x75316420]
        %v414 = vld.sshfl [vmem:[#allocation1 + $0x8] sm:$0xff pattern:$0x75316420]
        %v415 = vld.sshfl [vmem:[#allocation1 + $0x10] sm:$0xff pattern:$0x75316420]
        %416 = vrot.lane.b32.xlu0 %v413, 96
        %v417 = vpop.permute.xlu0 %416
        %418 = vrot.lane.b32.xlu0 %v414, 96
        %v419 = vpop.permute.xlu0 %418
        %420 = vrot.lane.b32.xlu0 %v415, 96
        %v421 = vpop.permute.xlu0 %420
        %vm422 = vcmask 785408
        %v423 = vsel %vm422, %v417, %v419
        %v424 = vsel %vm422, %v419, %v421
        %v427 = vsel %vm255, %v423, 0.0
        %v428 = vsel %vm256, %v424, 0.0
        %429 = vst [vmem:[#allocation3 + $0x30] sm:$0xf] %v427
        %430 = vst [vmem:[#allocation3 + $0x38] sm:$0xf] %v428
        %v431 = vld [vmem:[#allocation2] sm:$0xff]
        %v432 = vld [vmem:[#allocation2 + $0x8] sm:$0xf]
        %s435 = scalar_lea.vmem [#allocation1], 1
        %436 = vst [vmem:[%s435] ss:$2 sm:$0xff] %v431
        %s437 = scalar_lea.vmem [#allocation1], 17
        %438 = vst [vmem:[%s437] ss:$2 sm:$0xff] %v432
        %v439 = vld.sshfl [vmem:[#allocation1] sm:$0xff pattern:$0x75316420]
        %v440 = vld.sshfl [vmem:[#allocation1 + $0x8] sm:$0xff pattern:$0x75316420]
        %v441 = vld.sshfl [vmem:[#allocation1 + $0x10] sm:$0xff pattern:$0x75316420]
        %442 = vrot.lane.b32.xlu0 %v439, 95
        %v443 = vpop.permute.xlu0 %442
        %444 = vrot.lane.b32.xlu0 %v440, 95
        %v445 = vpop.permute.xlu0 %444
        %446 = vrot.lane.b32.xlu0 %v441, 95
        %v447 = vpop.permute.xlu0 %446
        %vm448 = vcmask 777216
        %v449 = vsel %vm448, %v443, %v445
        %v450 = vsel %vm448, %v445, %v447
        %453 = vst [vmem:[#allocation3 + $0x30] sm:$0xf0] %v449
        %454 = vst [vmem:[#allocation3 + $0x38] sm:$0xf0] %v450
        %v455 = vld [vmem:[#allocation2] sm:$0xff]
        %v456 = vld [vmem:[#allocation2 + $0x8] sm:$0xf]
        %459 = vst [vmem:[#allocation1] ss:$2 sm:$0xff] %v455
        %s460 = scalar_lea.vmem [#allocation1], 16
        %461 = vst [vmem:[%s460] ss:$2 sm:$0xff] %v456
        %v462 = vld.sshfl [vmem:[#allocation1] sm:$0xff pattern:$0x75316420]
        %v463 = vld.sshfl [vmem:[#allocation1 + $0x8] sm:$0xff pattern:$0x75316420]
        %v464 = vld.sshfl [vmem:[#allocation1 + $0x10] sm:$0xff pattern:$0x75316420]
        %465 = vrot.lane.b32.xlu0 %v462, 94
        %v466 = vpop.permute.xlu0 %465
        %467 = vrot.lane.b32.xlu0 %v463, 94
        %v468 = vpop.permute.xlu0 %467
        %469 = vrot.lane.b32.xlu0 %v464, 94
        %v470 = vpop.permute.xlu0 %469
        %vm471 = vcmask 769024
        %v472 = vsel %vm471, %v466, %v468
        %v473 = vsel %vm471, %v468, %v470
        %v476 = vsel %vm296, %v472, 0.0
        %v477 = vsel %vm297, %v473, 0.0
        %478 = vst [vmem:[#allocation3 + $0x40] sm:$0xf] %v476
        %479 = vst [vmem:[#allocation3 + $0x48] sm:$0xf] %v477
        %v480 = vld [vmem:[%s2] sm:$0xff]
        %v481 = vld [vmem:[#allocation3] sm:$0xff]
        %v482 = vld [vmem:[#allocation3 + $0x8] sm:$0xff]
        %v483 = vld [vmem:[#allocation3 + $0x10] sm:$0xff]
        %v484 = vld [vmem:[#allocation3 + $0x18] sm:$0xff]
        %v485 = vld [vmem:[#allocation3 + $0x20] sm:$0xff]
        %v486 = vld [vmem:[#allocation3 + $0x28] sm:$0xff]
        %v487 = vld [vmem:[#allocation3 + $0x30] sm:$0xff]
        %v488 = vld [vmem:[#allocation3 + $0x38] sm:$0xff]
        %v489 = vld [vmem:[#allocation3 + $0x40] sm:$0xf]
        %v490 = vld [vmem:[#allocation3 + $0x48] sm:$0xf]
        %v491 = vld [vmem:[%s3] sm:$0xff]
        %493 = vset.pattern.permute.xlu0 0
        %494 = vperm.xlu0 %493, %v491
        %v495 = vpop.permute.xlu0 %494
        %vm497 = vcmask 293888
        %v499 = vsel %vm497, %v480, 0
        %vm501 = vcmask 1043456
        %v503 = vsel %vm501, %v489, 0
        %v506 = vsel %vm501, %v490, 0
        %508 = vmatpush.msra.mxu0 0.0
        %509 = vmatpush.msra.mxu0 0.0
        %510 = vmatpush.msra.mxu0 0.0
        %511 = vmatpush.msra.mxu0 0.0
        %512 = vmatpush.msra.mxu0 0.0
        %513 = vmatpush.msra.mxu0 0.0
        %514 = vmatpush.msra.mxu0 0.0
        %515 = vmatpush.msra.mxu0 0.0
        %516 = vmatpush.msra.mxu0 0.0
        %517 = vmatpush.msra.mxu0 0.0
        %518 = vmatpush.msra.mxu0 0.0
        %519 = vmatpush.msra.mxu0 %v503
        %520 = vmatpush.msra.mxu0 %v487
        %521 = vmatpush.msra.mxu0 %v485
        %522 = vmatpush.msra.mxu0 %v483
        %523 = vmatpush.msra.mxu0 %v481
        %524 = vmatmul.f32.gmra.mxu0 %v499
        %v525 = vpop.f32.mrf.mxu0
        %v526 = vadd.f32 %v495, %v525
        %527 = vdwg.mxu0
        %528 = vmatpush.msra.mxu0 0.0
        %529 = vmatpush.msra.mxu0 0.0
        %530 = vmatpush.msra.mxu0 0.0
        %531 = vmatpush.msra.mxu0 0.0
        %532 = vmatpush.msra.mxu0 0.0
        %533 = vmatpush.msra.mxu0 0.0
        %534 = vmatpush.msra.mxu0 0.0
        %535 = vmatpush.msra.mxu0 0.0
        %536 = vmatpush.msra.mxu0 0.0
        %537 = vmatpush.msra.mxu0 0.0
        %538 = vmatpush.msra.mxu0 0.0
        %539 = vmatpush.msra.mxu0 %v506
        %540 = vmatpush.msra.mxu0 %v488
        %541 = vmatpush.msra.mxu0 %v486
        %542 = vmatpush.msra.mxu0 %v484
        %543 = vmatpush.msra.mxu0 %v482
        %544 = vmatmul.f32.gmra.mxu0 %v499
        %v545 = vpop.f32.mrf.mxu0
        %v546 = vadd.f32 %v495, %v545
        %547 = vdwg.mxu0
        %v548 = vmax.f32 %v526, 0.0
        %v549 = vmax.f32 %v546, 0.0
        %550 = vst [vmem:[%s230] sm:$0xff] %v548
        %551 = vst [vmem:[%s230 + $0x8] sm:$0xff] %v549
        %s552 = sand.u32 %s119, 1
        %s553 = scalar_lea.sflag [#allocation6], %s552
        %s554 = sand.u32 %s119, 1
        %s555 = smul.addr %s554, 16
        %s556 = scalar_lea.vmem [#allocation9], %s555
        // Predicated region
        $region45: #{tpu_custom_call.1} parent=35 // pred_check
          %p557 = pneg %p129
        $region46: #{tpu_custom_call.1} parent=35 // pred_check_branch
          %559 = sbr.rel (%p557) target = $region48
        $region47: #{tpu_custom_call.1} parent=35 // pred_region
          %561 = vsyncadd %s553, 0
          %s562 = smul.addr %s22, 2
          %s563 = smul.addr %s562, 8
          %s564 = scalar_lea.hbm %s4, %s563
          %s566 = sshll.u32 %s556, 4
          %s567 = int_to_ptr.vmem [resolvable:$true] %s566
          %s568 = sshll.u32 %s564, 4
          %s569 = int_to_ptr.hbm [resolvable:$true] %s568
          %571 = dma.vmem_to_hbm [thread:$0]  %s567, 256, %s569, %s553
        $region48: #{tpu_custom_call.1} parent=35 // pred_fallthru
          _
      $region36: #{tpu_custom_call.1} parent=5 // pred_fallthru
        _
      %p572 = scmp.le.s32.totalorder 2, %s17
      // Predicated region
      $region49: #{tpu_custom_call.1} parent=5 // pred_check
        %p573 = pneg %p572
      $region50: #{tpu_custom_call.1} parent=5 // pred_check_branch
        %575 = sbr.rel (%p573) target = $region52
      $region51: #{tpu_custom_call.1} parent=5 // pred_region
        %s576 = ssub.s32 %s17, 2
        // Predicated region
        $region53: #{tpu_custom_call.1} parent=51 // pred_check
          %p577 = pneg %p135
        $region54: #{tpu_custom_call.1} parent=51 // pred_check_branch
          %579 = sbr.rel (%p577) target = $region56
        $region55: #{tpu_custom_call.1} parent=51 // pred_region
          %s580 = sand.u32 %s120, 1
          %s581 = scalar_lea.sflag [#allocation6], %s580
          %s582 = sand.u32 %s120, 1
          %s583 = smul.addr %s582, 16
          %s584 = scalar_lea.vmem [#allocation9], %s583
          %586 = dma.done %s581, 256
        $region56: #{tpu_custom_call.1} parent=51 // pred_fallthru
          _
      $region52: #{tpu_custom_call.1} parent=5 // pred_fallthru
        _
    $region6: #{tpu_custom_call.1} parent=1 // loop_footer
      %s21 = sadd.s32 1, %s17
    $region7: #{tpu_custom_call.1} parent=1 // loop_footer_branch
      %16 = sbr.rel target = $region3
    $region8: #{tpu_custom_call.1} parent=1 // loop_exit
      _
    %587 = vsyncpa [#allocation5], 1
    %s588 = scalar_lea.sflag [#allocation5], 1
    %589 = vsyncpa %s588, 1
    %590 = vsyncpa [#allocation8], 1
    %591 = vsyncpa [#allocation6], 1
    %s592 = scalar_lea.sflag [#allocation6], 1
    %593 = vsyncpa %s592, 1

</llo_original>
